<compile_context>
chip_gen: v6e
topology: v6e:2x2x1
jax: 0.10.0
libtpu: 0.0.40
codegen_flags: <defaults>
</compile_context>

<pallas_src>
import functools

import jax
import jax.numpy as jnp
from jax import lax
from jax.experimental import pallas as pl
from jax.experimental.pallas import tpu as pltpu


def _round_up(n, m):
    return ((n + m - 1) // m) * m


def _pick_tile(hw, cap=1024):
    """Largest divisor of hw that is a multiple of 8 and <= cap."""
    best = 8
    for d in range(8, min(hw, cap) + 1, 8):
        if hw % d == 0:
            best = d
    return best


def _im2col_3x3_nhwc(x):
    """x: [N, C, H, W] (bf16) -> patches [N*H*W, 9*C] (tap-major, chan-minor)."""
    N, C, H, W = x.shape
    xn = jnp.transpose(x, (0, 2, 3, 1))                       # [N, H, W, C]
    xp = jnp.pad(xn, ((0, 0), (1, 1), (1, 1), (0, 0)))
    taps = [xp[:, kh:kh + H, kw:kw + W, :]
            for kh in range(3) for kw in range(3)]
    patches = jnp.concatenate(taps, axis=-1)                  # [N, H, W, 9C]
    return patches.reshape(N * H * W, 9 * C)


# ----------------------------------------------------------------------------
# Fused kernel.  grid = (N, HW // tm):
#   axis 0: image index, axis 1: spatial-tile reduction.
#   patches block [tm, K] (bf16) is the only streamed input; all parameter
#   slabs are small constant-index blocks resident in VMEM.
#   Outputs (logits [n_pad, nc_pad], emb [n_pad, proj_pad]) use constant index
#   maps -> stay resident and are stored dense exactly once at the last step.
# ----------------------------------------------------------------------------
def _backbone_kernel(p_ref, wc_ref, bc_ref, wfc_ref, bfc_ref, w1_ref, b1_ref,
                     w2_ref, b2_ref, logits_ref, emb_ref, pool_acc, feat_all,
                     *, inv_hw):
    n = pl.program_id(0)
    t = pl.program_id(1)
    n_last = pl.num_programs(0) - 1
    t_last = pl.num_programs(1) - 1

    @pl.when((n == 0) & (t == 0))
    def _init_feat():
        feat_all[...] = jnp.zeros_like(feat_all)

    @pl.when(t == 0)
    def _init_pool():
        pool_acc[...] = jnp.zeros_like(pool_acc)

    # conv as im2col matmul: [tm, K] @ [K, OUT_PAD], bf16 in / f32 accumulate.
    acc = jnp.dot(p_ref[...], wc_ref[...], preferred_element_type=jnp.float32)
    act = jnp.maximum(acc + bc_ref[...], 0.0)                  # [tm, OUT_PAD]

    # Spatial partial sum on the MXU (ones-vector matmul) instead of a
    # per-step XLU cross-sublane reduce; every result row equals the tile's
    # column sum, accumulated into a full-width f32 scratch.
    ones8 = jnp.ones((8, act.shape[0]), jnp.float32)
    pool_acc[...] += jnp.dot(ones8, act, preferred_element_type=jnp.float32)

    @pl.when(t == t_last)
    def _finalize_image():
        # mean = sum * 1/(H*W); single 1-row store per image into scratch.
        feat = pool_acc[...][0:1, :] * inv_hw                  # [1, OUT_PAD]
        feat_all[pl.ds(n, 1), :] = feat

    @pl.when((n == n_last) & (t == t_last))
    def _head():
        # Whole-batch head: fc, Linear-ReLU-Linear, L2 normalize.
        feat_b = feat_all[...].astype(jnp.bfloat16)            # [N_PAD, OUT_PAD]
        logits_ref[...] = (
            jnp.dot(feat_b, wfc_ref[...], preferred_element_type=jnp.float32)
            + bfc_ref[...])
        h = jnp.maximum(
            jnp.dot(feat_b, w1_ref[...], preferred_element_type=jnp.float32)
            + b1_ref[...], 0.0)
        emb = (jnp.dot(h.astype(jnp.bfloat16), w2_ref[...],
                       preferred_element_type=jnp.float32) + b2_ref[...])
        # F.normalize(emb, p=2, dim=1, eps=1e-12): emb * rsqrt(max(||.||^2, eps^2))
        sq = jnp.sum(emb * emb, axis=-1, keepdims=True)
        inv = lax.rsqrt(jnp.maximum(sq, 1e-24))
        emb_ref[...] = emb * inv


def prepare_params(params):
    """Pad/cast parameter slabs ONCE (lane-dense, MXU-ready dtypes)."""
    f32, bf16 = jnp.float32, jnp.bfloat16
    w_conv = params["w_conv"]
    K, out_dim = w_conv.shape
    num_classes = params["w_fc"].shape[1]
    proj_dim = params["w_h2"].shape[1]
    out_pad = _round_up(out_dim, 128)
    nc_pad = _round_up(num_classes, 128)
    proj_pad = _round_up(proj_dim, 128)

    def pad2(a, r, c, dt):
        return jnp.zeros((r, c), dt).at[:a.shape[0], :a.shape[1]].set(a.astype(dt))

    padded = {
        "w_conv": pad2(w_conv, K, out_pad, bf16),
        "b_conv": pad2(params["b_conv"], 1, out_pad, f32),
        "w_fc":   pad2(params["w_fc"], out_pad, nc_pad, bf16),
        "b_fc":   pad2(params["b_fc"], 1, nc_pad, f32),
        "w_h1":   pad2(params["w_h1"], out_pad, out_pad, bf16),
        "b_h1":   pad2(params["b_h1"], 1, out_pad, f32),
        "w_h2":   pad2(params["w_h2"], out_pad, proj_pad, bf16),
        "b_h2":   pad2(params["b_h2"], 1, proj_pad, f32),
    }
    dims = {"out_dim": out_dim, "num_classes": num_classes, "proj_dim": proj_dim}
    return padded, dims


def backbone_forward(x, pp, *, num_classes, proj_dim, tm_cap=1024):
    """Training-mode BackBone.forward: (logits, F.normalize(embedding))."""
    N, C, H, W = x.shape
    HW = H * W
    K = 9 * C
    assert HW % 8 == 0

    out_pad = pp["w_conv"].shape[1]
    nc_pad = pp["w_fc"].shape[1]
    proj_pad = pp["w_h2"].shape[1]
    n_pad = _round_up(N, 8)

    tm = _pick_tile(HW, tm_cap)
    t_steps = HW // tm
    inv_hw = 1.0 / float(HW)

    # bf16 im2col (cast BEFORE transpose/pad/concat -> half the HBM traffic).
    patches = _im2col_3x3_nhwc(x.astype(jnp.bfloat16))        # [N*HW, K] bf16
    # TODO(synk): move im2col into the kernel (halo-tile DMA + in-VMEM taps)
    # to remove the 9x patch materialization in HBM.

    logits_p, emb_p = pl.pallas_call(
        functools.partial(_backbone_kernel, inv_hw=inv_hw),
        out_shape=(
            jax.ShapeDtypeStruct((n_pad, nc_pad), jnp.float32),
            jax.ShapeDtypeStruct((n_pad, proj_pad), jnp.float32),
        ),
        grid=(N, t_steps),
        in_specs=[
            pl.BlockSpec((tm, K), lambda n, t: (n * t_steps + t, 0)),
            pl.BlockSpec((K, out_pad), lambda n, t: (0, 0)),
            pl.BlockSpec((1, out_pad), lambda n, t: (0, 0)),
            pl.BlockSpec((out_pad, nc_pad), lambda n, t: (0, 0)),
            pl.BlockSpec((1, nc_pad), lambda n, t: (0, 0)),
            pl.BlockSpec((out_pad, out_pad), lambda n, t: (0, 0)),
            pl.BlockSpec((1, out_pad), lambda n, t: (0, 0)),
            pl.BlockSpec((out_pad, proj_pad), lambda n, t: (0, 0)),
            pl.BlockSpec((1, proj_pad), lambda n, t: (0, 0)),
        ],
        out_specs=(
            pl.BlockSpec((n_pad, nc_pad), lambda n, t: (0, 0)),
            pl.BlockSpec((n_pad, proj_pad), lambda n, t: (0, 0)),
        ),
        scratch_shapes=[
            pltpu.VMEM((8, out_pad), jnp.float32),       # per-image pool accumulator
            pltpu.VMEM((n_pad, out_pad), jnp.float32),   # pooled features, all images
        ],
        compiler_params=pltpu.CompilerParams(
            # Output blocks are revisited along BOTH axes -> both "arbitrary".
            dimension_semantics=("arbitrary", "arbitrary"),
            vmem_limit_bytes=32 * 1024 * 1024,
        ),
    )(patches, pp["w_conv"], pp["b_conv"], pp["w_fc"], pp["b_fc"],
      pp["w_h1"], pp["b_h1"], pp["w_h2"], pp["b_h2"])

    return logits_p[:N, :num_classes], emb_p[:N, :proj_dim]


def init_params(key, in_channels, out_dim, num_classes, proj_dim):
    ks = jax.random.split(key, 8)
    s = 0.1
    K = 9 * in_channels
    return {
        "w_conv": s * jax.random.normal(ks[0], (K, out_dim), jnp.float32),
        "b_conv": s * jax.random.normal(ks[1], (1, out_dim), jnp.float32),
        "w_fc":   s * jax.random.normal(ks[2], (out_dim, num_classes), jnp.float32),
        "b_fc":   s * jax.random.normal(ks[3], (1, num_classes), jnp.float32),
        "w_h1":   s * jax.random.normal(ks[4], (out_dim, out_dim), jnp.float32),
        "b_h1":   s * jax.random.normal(ks[5], (1, out_dim), jnp.float32),
        "w_h2":   s * jax.random.normal(ks[6], (out_dim, proj_dim), jnp.float32),
        "b_h2":   s * jax.random.normal(ks[7], (1, proj_dim), jnp.float32),
    }


if __name__ == "__main__":
    key = jax.random.PRNGKey(0)
    k_x, k_p = jax.random.split(key)

    # small shapes: batch=2, channels=4, spatial=16x16, encoder out_dim=32,
    # num_classes=10, projection dim=128 (matches dim=128 default).
    N, C, H, W = 2, 4, 16, 16
    OUT_DIM, NUM_CLASSES, PROJ_DIM = 32, 10, 128

    x = jax.random.normal(k_x, (N, C, H, W), jnp.float32)     # NCHW, like PyTorch
    params = init_params(k_p, C, OUT_DIM, NUM_CLASSES, PROJ_DIM)
    padded, dims = prepare_params(params)                     # pad/cast ONCE

    fwd = jax.jit(functools.partial(backbone_forward,
                                    num_classes=dims["num_classes"],
                                    proj_dim=dims["proj_dim"]))
    logits, emb = fwd(x, padded)
    jax.block_until_ready((logits, emb))

    assert logits.shape == (N, NUM_CLASSES)
    assert emb.shape == (N, PROJ_DIM)
    assert bool(jnp.all(jnp.isfinite(logits)))
    # embedding rows must be unit-norm (F.normalize semantics)
    norms = jnp.linalg.norm(emb, axis=-1)
    assert bool(jnp.all(jnp.abs(norms - 1.0) < 1e-3))

    print("KERNEL_OK")
</pallas_src>

<mosaic_0001>
module attributes {stable_mosaic.version = 11 : i64} {
  func.func @_backbone_kernel(%arg0: i32, %arg1: i32, %arg2: memref<256x36xbf16, #tpu.memory_space<vmem>>, %arg3: memref<36x128xbf16, #tpu.memory_space<vmem>>, %arg4: memref<1x128xf32, #tpu.memory_space<vmem>>, %arg5: memref<128x128xbf16, #tpu.memory_space<vmem>>, %arg6: memref<1x128xf32, #tpu.memory_space<vmem>>, %arg7: memref<128x128xbf16, #tpu.memory_space<vmem>>, %arg8: memref<1x128xf32, #tpu.memory_space<vmem>>, %arg9: memref<128x128xbf16, #tpu.memory_space<vmem>>, %arg10: memref<1x128xf32, #tpu.memory_space<vmem>>, %arg11: memref<8x128xf32, #tpu.memory_space<vmem>>, %arg12: memref<8x128xf32, #tpu.memory_space<vmem>>, %arg13: memref<8x128xf32, #tpu.memory_space<vmem>>, %arg14: memref<8x128xf32, #tpu.memory_space<vmem>>) attributes {dimension_semantics = [#tpu.dimension_semantics<arbitrary>, #tpu.dimension_semantics<arbitrary>], iteration_bounds = array<i64: 2, 1>, scalar_prefetch = 0 : i64, scratch_operands = 2 : i64, tpu.core_type = #tpu.core_type<tc>, window_params = [{transform_indices = @transform_0, window_bounds = array<i64: 256, 36>}, {pipeline_mode = #tpu.pipeline_mode<synchronous>, transform_indices = @transform_1, window_bounds = array<i64: 36, 128>}, {pipeline_mode = #tpu.pipeline_mode<synchronous>, transform_indices = @transform_2, window_bounds = array<i64: 1, 128>}, {pipeline_mode = #tpu.pipeline_mode<synchronous>, transform_indices = @transform_3, window_bounds = array<i64: 128, 128>}, {pipeline_mode = #tpu.pipeline_mode<synchronous>, transform_indices = @transform_4, window_bounds = array<i64: 1, 128>}, {pipeline_mode = #tpu.pipeline_mode<synchronous>, transform_indices = @transform_5, window_bounds = array<i64: 128, 128>}, {pipeline_mode = #tpu.pipeline_mode<synchronous>, transform_indices = @transform_6, window_bounds = array<i64: 1, 128>}, {pipeline_mode = #tpu.pipeline_mode<synchronous>, transform_indices = @transform_7, window_bounds = array<i64: 128, 128>}, {pipeline_mode = #tpu.pipeline_mode<synchronous>, transform_indices = @transform_8, window_bounds = array<i64: 1, 128>}, {pipeline_mode = #tpu.pipeline_mode<synchronous>, transform_indices = @transform_9, window_bounds = array<i64: 8, 128>}, {pipeline_mode = #tpu.pipeline_mode<synchronous>, transform_indices = @transform_10, window_bounds = array<i64: 8, 128>}]} {
    %c0_i32 = arith.constant 0 : i32
    %0 = arith.cmpi eq, %arg0, %c0_i32 : i32
    %c0_i32_0 = arith.constant 0 : i32
    %1 = arith.cmpi eq, %arg1, %c0_i32_0 : i32
    %2 = arith.andi %0, %1 : i1
    %3 = arith.extui %2 : i1 to i32
    %c0_i32_1 = arith.constant 0 : i32
    %4 = arith.cmpi ne, %3, %c0_i32_1 : i32
    scf.if %4 {
      %cst_20 = arith.constant 0.000000e+00 : f32
      %29 = vector.broadcast %cst_20 : f32 to vector<8x128xf32>
      %c0_21 = arith.constant 0 : index
      %c0_22 = arith.constant 0 : index
      %30 = vector.load %arg14[%c0_21, %c0_22] : memref<8x128xf32, #tpu.memory_space<vmem>>, vector<8x128xf32>
      tpu.vector_store %arg14[%c0_21, %c0_22], %29 {strides = array<i32>} : memref<8x128xf32, #tpu.memory_space<vmem>>, vector<8x128xf32>,
    } else {
    }
    %c0_i32_2 = arith.constant 0 : i32
    %5 = arith.cmpi eq, %arg1, %c0_i32_2 : i32
    %6 = arith.extui %5 : i1 to i32
    %c0_i32_3 = arith.constant 0 : i32
    %7 = arith.cmpi ne, %6, %c0_i32_3 : i32
    scf.if %7 {
      %cst_20 = arith.constant 0.000000e+00 : f32
      %29 = vector.broadcast %cst_20 : f32 to vector<8x128xf32>
      %c0_21 = arith.constant 0 : index
      %c0_22 = arith.constant 0 : index
      %30 = vector.load %arg13[%c0_21, %c0_22] : memref<8x128xf32, #tpu.memory_space<vmem>>, vector<8x128xf32>
      tpu.vector_store %arg13[%c0_21, %c0_22], %29 {strides = array<i32>} : memref<8x128xf32, #tpu.memory_space<vmem>>, vector<8x128xf32>,
    } else {
    }
    %c0 = arith.constant 0 : index
    %c0_4 = arith.constant 0 : index
    %8 = vector.load %arg2[%c0, %c0_4] : memref<256x36xbf16, #tpu.memory_space<vmem>>, vector<256x36xbf16>
    %c0_5 = arith.constant 0 : index
    %c0_6 = arith.constant 0 : index
    %9 = vector.load %arg3[%c0_5, %c0_6] : memref<36x128xbf16, #tpu.memory_space<vmem>>, vector<36x128xbf16>
    %cst = arith.constant dense<0.000000e+00> : vector<256x128xf32>
    %10 = tpu.matmul %8, %9, %cst {dimension_numbers = #tpu.dot_dimension_numbers<[1], [0], [0], [1], [0, 0, 1, 1], [], []>} : vector<256x36xbf16>, vector<36x128xbf16>, vector<256x128xf32> -> vector<256x128xf32>
    %c0_7 = arith.constant 0 : index
    %c0_8 = arith.constant 0 : index
    %11 = vector.load %arg4[%c0_7, %c0_8] : memref<1x128xf32, #tpu.memory_space<vmem>>, vector<1x128xf32>
    %12 = vector.broadcast %11 : vector<1x128xf32> to vector<256x128xf32>
    %13 = arith.addf %10, %12 : vector<256x128xf32>
    %cst_9 = arith.constant 0.000000e+00 : f32
    %14 = vector.broadcast %cst_9 : f32 to vector<256x128xf32>
    %15 = arith.maximumf %13, %14 : vector<256x128xf32>
    %cst_10 = arith.constant 1.000000e+00 : f32
    %16 = vector.broadcast %cst_10 : f32 to vector<8x256xf32>
    %c0_11 = arith.constant 0 : index
    %c0_12 = arith.constant 0 : index
    %17 = vector.load %arg13[%c0_11, %c0_12] : memref<8x128xf32, #tpu.memory_space<vmem>>, vector<8x128xf32>
    %cst_13 = arith.constant dense<0.000000e+00> : vector<8x128xf32>
    %18 = tpu.matmul %16, %15, %cst_13 {dimension_numbers = #tpu.dot_dimension_numbers<[1], [0], [0], [1], [0, 0, 1, 1], [], []>} : vector<8x256xf32>, vector<256x128xf32>, vector<8x128xf32> -> vector<8x128xf32>
    %19 = arith.addf %17, %18 : vector<8x128xf32>
    %c0_14 = arith.constant 0 : index
    %c0_15 = arith.constant 0 : index
    %20 = vector.load %arg13[%c0_14, %c0_15] : memref<8x128xf32, #tpu.memory_space<vmem>>, vector<8x128xf32>
    tpu.vector_store %arg13[%c0_14, %c0_15], %19 {strides = array<i32>} : memref<8x128xf32, #tpu.memory_space<vmem>>, vector<8x128xf32>,
    %c0_i32_16 = arith.constant 0 : i32
    %21 = arith.cmpi eq, %arg1, %c0_i32_16 : i32
    %22 = arith.extui %21 : i1 to i32
    %c0_i32_17 = arith.constant 0 : i32
    %23 = arith.cmpi ne, %22, %c0_i32_17 : i32
    scf.if %23 {
      %c0_20 = arith.constant 0 : index
      %c0_21 = arith.constant 0 : index
      %29 = vector.load %arg13[%c0_20, %c0_21] : memref<8x128xf32, #tpu.memory_space<vmem>>, vector<8x128xf32>
      %30 = vector.extract_strided_slice %29 {offsets = [0, 0], sizes = [1, 128], strides = [1, 1]} : vector<8x128xf32> to vector<1x128xf32>
      %cst_22 = arith.constant 3.906250e-03 : f32
      %31 = vector.broadcast %cst_22 : f32 to vector<1x128xf32>
      %32 = arith.mulf %30, %31 : vector<1x128xf32>
      %33 = arith.index_cast %arg0 : i32 to index
      %c0_23 = arith.constant 0 : index
      %34 = vector.load %arg14[%33, %c0_23] : memref<8x128xf32, #tpu.memory_space<vmem>>, vector<1x128xf32>
      tpu.vector_store %arg14[%33, %c0_23], %32 {strides = array<i32>} : memref<8x128xf32, #tpu.memory_space<vmem>>, vector<1x128xf32>,
    } else {
    }
    %c1_i32 = arith.constant 1 : i32
    %24 = arith.cmpi eq, %arg0, %c1_i32 : i32
    %c0_i32_18 = arith.constant 0 : i32
    %25 = arith.cmpi eq, %arg1, %c0_i32_18 : i32
    %26 = arith.andi %24, %25 : i1
    %27 = arith.extui %26 : i1 to i32
    %c0_i32_19 = arith.constant 0 : i32
    %28 = arith.cmpi ne, %27, %c0_i32_19 : i32
    scf.if %28 {
      %c0_20 = arith.constant 0 : index
      %c0_21 = arith.constant 0 : index
      %29 = vector.load %arg14[%c0_20, %c0_21] : memref<8x128xf32, #tpu.memory_space<vmem>>, vector<8x128xf32>
      %30 = arith.truncf %29 : vector<8x128xf32> to vector<8x128xbf16>
      %c0_22 = arith.constant 0 : index
      %c0_23 = arith.constant 0 : index
      %31 = vector.load %arg5[%c0_22, %c0_23] : memref<128x128xbf16, #tpu.memory_space<vmem>>, vector<128x128xbf16>
      %cst_24 = arith.constant dense<0.000000e+00> : vector<8x128xf32>
      %32 = tpu.matmul %30, %31, %cst_24 {dimension_numbers = #tpu.dot_dimension_numbers<[1], [0], [0], [1], [0, 0, 1, 1], [], []>} : vector<8x128xbf16>, vector<128x128xbf16>, vector<8x128xf32> -> vector<8x128xf32>
      %c0_25 = arith.constant 0 : index
      %c0_26 = arith.constant 0 : index
      %33 = vector.load %arg6[%c0_25, %c0_26] : memref<1x128xf32, #tpu.memory_space<vmem>>, vector<1x128xf32>
      %34 = vector.broadcast %33 : vector<1x128xf32> to vector<8x128xf32>
      %35 = arith.addf %32, %34 : vector<8x128xf32>
      %c0_27 = arith.constant 0 : index
      %c0_28 = arith.constant 0 : index
      %36 = vector.load %arg11[%c0_27, %c0_28] : memref<8x128xf32, #tpu.memory_space<vmem>>, vector<8x128xf32>
      tpu.vector_store %arg11[%c0_27, %c0_28], %35 {strides = array<i32>} : memref<8x128xf32, #tpu.memory_space<vmem>>, vector<8x128xf32>,
      %c0_29 = arith.constant 0 : index
      %c0_30 = arith.constant 0 : index
      %37 = vector.load %arg7[%c0_29, %c0_30] : memref<128x128xbf16, #tpu.memory_space<vmem>>, vector<128x128xbf16>
      %cst_31 = arith.constant dense<0.000000e+00> : vector<8x128xf32>
      %38 = tpu.matmul %30, %37, %cst_31 {dimension_numbers = #tpu.dot_dimension_numbers<[1], [0], [0], [1], [0, 0, 1, 1], [], []>} : vector<8x128xbf16>, vector<128x128xbf16>, vector<8x128xf32> -> vector<8x128xf32>
      %c0_32 = arith.constant 0 : index
      %c0_33 = arith.constant 0 : index
      %39 = vector.load %arg8[%c0_32, %c0_33] : memref<1x128xf32, #tpu.memory_space<vmem>>, vector<1x128xf32>
      %40 = vector.broadcast %39 : vector<1x128xf32> to vector<8x128xf32>
      %41 = arith.addf %38, %40 : vector<8x128xf32>
      %cst_34 = arith.constant 0.000000e+00 : f32
      %42 = vector.broadcast %cst_34 : f32 to vector<8x128xf32>
      %43 = arith.maximumf %41, %42 : vector<8x128xf32>
      %44 = arith.truncf %43 : vector<8x128xf32> to vector<8x128xbf16>
      %c0_35 = arith.constant 0 : index
      %c0_36 = arith.constant 0 : index
      %45 = vector.load %arg9[%c0_35, %c0_36] : memref<128x128xbf16, #tpu.memory_space<vmem>>, vector<128x128xbf16>
      %cst_37 = arith.constant dense<0.000000e+00> : vector<8x128xf32>
      %46 = tpu.matmul %44, %45, %cst_37 {dimension_numbers = #tpu.dot_dimension_numbers<[1], [0], [0], [1], [0, 0, 1, 1], [], []>} : vector<8x128xbf16>, vector<128x128xbf16>, vector<8x128xf32> -> vector<8x128xf32>
      %c0_38 = arith.constant 0 : index
      %c0_39 = arith.constant 0 : index
      %47 = vector.load %arg10[%c0_38, %c0_39] : memref<1x128xf32, #tpu.memory_space<vmem>>, vector<1x128xf32>
      %48 = vector.broadcast %47 : vector<1x128xf32> to vector<8x128xf32>
      %49 = arith.addf %46, %48 : vector<8x128xf32>
      %50 = arith.mulf %49, %49 : vector<8x128xf32>
      %cst_40 = arith.constant dense<0.000000e+00> : vector<8xf32>
      %51 = vector.multi_reduction <add>, %50, %cst_40 [1] : vector<8x128xf32> to vector<8xf32>
      %52 = vector.shape_cast %51 : vector<8xf32> to vector<8x1xf32>
      %cst_41 = arith.constant 1.000000e-24 : f32
      %53 = vector.broadcast %cst_41 : f32 to vector<8x1xf32>
      %54 = arith.maximumf %52, %53 : vector<8x1xf32>
      %55 = math.rsqrt %54 : vector<8x1xf32>
      %56 = vector.broadcast %55 : vector<8x1xf32> to vector<8x128xf32>
      %57 = arith.mulf %49, %56 : vector<8x128xf32>
      %c0_42 = arith.constant 0 : index
      %c0_43 = arith.constant 0 : index
      %58 = vector.load %arg12[%c0_42, %c0_43] : memref<8x128xf32, #tpu.memory_space<vmem>>, vector<8x128xf32>
      tpu.vector_store %arg12[%c0_42, %c0_43], %57 {strides = array<i32>} : memref<8x128xf32, #tpu.memory_space<vmem>>, vector<8x128xf32>,
    } else {
    }
    return
  }
  func.func @transform_0(%arg0: i32, %arg1: i32) -> (i32, i32) {
    %c1_i32 = arith.constant 1 : i32
    %0 = arith.muli %arg0, %c1_i32 : i32
    %1 = arith.addi %0, %arg1 : i32
    %c0_i32 = arith.constant 0 : i32
    %c0_i32_0 = arith.constant 0 : i32
    return %1, %c0_i32 : i32, i32
  }
  func.func @transform_1(%arg0: i32, %arg1: i32) -> (i32, i32) {
    %c0_i32 = arith.constant 0 : i32
    %c0_i32_0 = arith.constant 0 : i32
    %c0_i32_1 = arith.constant 0 : i32
    return %c0_i32, %c0_i32_0 : i32, i32
  }
  func.func @transform_2(%arg0: i32, %arg1: i32) -> (i32, i32) {
    %c0_i32 = arith.constant 0 : i32
    %c0_i32_0 = arith.constant 0 : i32
    %c0_i32_1 = arith.constant 0 : i32
    return %c0_i32, %c0_i32_0 : i32, i32
  }
  func.func @transform_3(%arg0: i32, %arg1: i32) -> (i32, i32) {
    %c0_i32 = arith.constant 0 : i32
    %c0_i32_0 = arith.constant 0 : i32
    %c0_i32_1 = arith.constant 0 : i32
    return %c0_i32, %c0_i32_0 : i32, i32
  }
  func.func @transform_4(%arg0: i32, %arg1: i32) -> (i32, i32) {
    %c0_i32 = arith.constant 0 : i32
    %c0_i32_0 = arith.constant 0 : i32
    %c0_i32_1 = arith.constant 0 : i32
    return %c0_i32, %c0_i32_0 : i32, i32
  }
  func.func @transform_5(%arg0: i32, %arg1: i32) -> (i32, i32) {
    %c0_i32 = arith.constant 0 : i32
    %c0_i32_0 = arith.constant 0 : i32
    %c0_i32_1 = arith.constant 0 : i32
    return %c0_i32, %c0_i32_0 : i32, i32
  }
  func.func @transform_6(%arg0: i32, %arg1: i32) -> (i32, i32) {
    %c0_i32 = arith.constant 0 : i32
    %c0_i32_0 = arith.constant 0 : i32
    %c0_i32_1 = arith.constant 0 : i32
    return %c0_i32, %c0_i32_0 : i32, i32
  }
  func.func @transform_7(%arg0: i32, %arg1: i32) -> (i32, i32) {
    %c0_i32 = arith.constant 0 : i32
    %c0_i32_0 = arith.constant 0 : i32
    %c0_i32_1 = arith.constant 0 : i32
    return %c0_i32, %c0_i32_0 : i32, i32
  }
  func.func @transform_8(%arg0: i32, %arg1: i32) -> (i32, i32) {
    %c0_i32 = arith.constant 0 : i32
    %c0_i32_0 = arith.constant 0 : i32
    %c0_i32_1 = arith.constant 0 : i32
    return %c0_i32, %c0_i32_0 : i32, i32
  }
  func.func @transform_9(%arg0: i32, %arg1: i32) -> (i32, i32) {
    %c0_i32 = arith.constant 0 : i32
    %c0_i32_0 = arith.constant 0 : i32
    %c0_i32_1 = arith.constant 0 : i32
    return %c0_i32, %c0_i32_0 : i32, i32
  }
  func.func @transform_10(%arg0: i32, %arg1: i32) -> (i32, i32) {
    %c0_i32 = arith.constant 0 : i32
    %c0_i32_0 = arith.constant 0 : i32
    %c0_i32_1 = arith.constant 0 : i32
    return %c0_i32, %c0_i32_0 : i32, i32
  }
}

</mosaic_0001>

<llo_original>
// kernel: backbone_forward.1
$region0: #{backbone_forward.1}
  #allocation0 [shape = 'u32[]', space=smem, size = 0x4, offset = 0x4, fixed_abs, tag = 'smem constant byte address 0x4 - core index']
  #allocation1 [shape = 'u32[144,128]{1,0:T(1,128)}', space=vmem, size = 0x12000, scoped, tag = 'internal scratch']
  #allocation2 [shape = 'f32[8,128]{1,0:T(8,128)}', space=vmem, size = 0x1000, scoped, tag = 'scratch operand']
  #allocation3 [shape = 'f32[8,128]{1,0:T(8,128)}', space=vmem, size = 0x1000, scoped, tag = 'scratch operand']
  %s0 = inlined_call_operand.vmem [shape: bf16[512,36], index: 0, kind: input, shape index: {}]
  %s1 = inlined_call_operand.vmem [shape: bf16[36,128], index: 1, kind: input, shape index: {}]
  %s2 = inlined_call_operand.vmem [shape: f32[1,128], index: 2, kind: input, shape index: {}]
  %s3 = inlined_call_operand.vmem [shape: bf16[128,128], index: 3, kind: input, shape index: {}]
  %s4 = inlined_call_operand.vmem [shape: f32[1,128], index: 4, kind: input, shape index: {}]
  %s5 = inlined_call_operand.vmem [shape: bf16[128,128], index: 5, kind: input, shape index: {}]
  %s6 = inlined_call_operand.vmem [shape: f32[1,128], index: 6, kind: input, shape index: {}]
  %s7 = inlined_call_operand.vmem [shape: bf16[128,128], index: 7, kind: input, shape index: {}]
  %s8 = inlined_call_operand.vmem [shape: f32[1,128], index: 8, kind: input, shape index: {}]
  %s9 = inlined_call_operand.vmem [shape: f32[8,128], index: 9, kind: output, shape index: {0}]
  %s10 = inlined_call_operand.vmem [shape: f32[8,128], index: 10, kind: output, shape index: {1}]
  %11 = xla_tuple %s9, %s10
  %s12 = sld [smem:[#allocation0]]
  $region93: #{backbone_forward.1} parent=0
    _
  %s14 = ssub.s32 1, %s12
  %s15 = scalar_select 0, %s14, %s12
  loop: start=0, step=1, limit=4
  $region2: #{backbone_forward.1} parent=0 // loop_pre_header
    _
  $region3: #{backbone_forward.1} parent=0 // loop_header
    %s17 = sphi 0, %s21
    %p18 = scmp.ge.s32.totalorder %s17, 4
    %s24 = sphi 0, %s36
    %s25 = sphi 0, %s32
    %s26 = sphi 0, %s24
    %s27 = sphi 0, %s25
    %s28 = sphi 0, %s26
    %s29 = sphi 0, %s27
    %s41 = sphi 0, %s43
    %s44 = sphi 0, %s41
    %s45 = sphi 0, %s44
    %s61 = sphi 0, %s45
    %s65 = sphi 0, %s65
    %s67 = sphi 0, %s65
    %s68 = sphi 0, %s67
    %s82 = sphi 0, %s68
    %s86 = sphi 0, %s86
    %s88 = sphi 0, %s86
    %s89 = sphi 0, %s88
    %s103 = sphi 0, %s89
    %s107 = sphi 0, %s107
    %s109 = sphi 0, %s107
    %s110 = sphi 0, %s109
    %s124 = sphi 0, %s110
    %s128 = sphi 0, %s128
    %s130 = sphi 0, %s128
    %s131 = sphi 0, %s130
    %s145 = sphi 0, %s131
    %s149 = sphi 0, %s149
    %s151 = sphi 0, %s149
    %s152 = sphi 0, %s151
    %s166 = sphi 0, %s152
    %s170 = sphi 0, %s170
    %s172 = sphi 0, %s170
    %s173 = sphi 0, %s172
    %s187 = sphi 0, %s173
    %s191 = sphi 0, %s191
    %s193 = sphi 0, %s191
    %s194 = sphi 0, %s193
    %s208 = sphi 0, %s194
    %s212 = sphi 0, %s212
    %s214 = sphi 0, %s212
    %s215 = sphi 0, %s214
    %s229 = sphi 0, %s215
    %s233 = sphi 0, %s233
    %s235 = sphi 0, %s233
    %s236 = sphi 0, %s235
    %s250 = sphi 0, %s236
    %s254 = sphi 0, %s254
    %s256 = sphi 0, %s254
    %s257 = sphi 0, %s256
    %s271 = sphi 0, %s257
  $region4: #{backbone_forward.1} parent=0 // loop_header_branch
    %20 = sbr.rel (%p18) target = $region8
  $region5: #{backbone_forward.1} parent=0 // loop_body
    %s22 = ssub.s32 %s17, 1
    %s23 = ssub.s32 %s17, 2
    %s30 = sadd.s32 1, %s25
    %p31 = scmp.ge.s32.totalorder %s30, 1
    %s32 = scalar_select %p31, 0, %s30
    %s33 = sadd.s32 1, %s24
    %s34 = scalar_select %p31, %s33, %s24
    %p35 = scmp.ge.s32.totalorder %s34, 2
    %s36 = scalar_select %p35, 0, %s34
    %s37 = sadd.s32 %s24, %s25
    %s38 = sadd.s32 %s36, %s32
    %s39 = ssub.s32 %s37, %s38
    %p40 = scmp.eq.s32.totalorder %s39, 0
    %s42 = sadd.s32 %s41, 1
    %s43 = scalar_select %p40, %s41, %s42
    %p46 = pneg %p40
    %p47 = scmp.eq.s32.totalorder %s17, 1
    %p48 = por %p46, %p47
    %p49 = scmp.ne.s32.totalorder %s41, %s44
    %p50 = scmp.eq.s32.totalorder %s17, 0
    %p51 = por %p49, %p50
    %p52 = scmp.ne.s32.totalorder %s41, %s44
    %p53 = scmp.eq.s32.totalorder %s22, 1
    %p54 = por %p52, %p53
    %p55 = scmp.ne.s32.totalorder %s44, %s45
    %p56 = scmp.eq.s32.totalorder %s22, 0
    %p57 = por %p55, %p56
    %p58 = scmp.ne.s32.totalorder %s44, %s45
    %p59 = scmp.eq.s32.totalorder %s23, 1
    %p60 = por %p58, %p59
    %p62 = scmp.ne.s32.totalorder %s45, %s61
    %p63 = scmp.eq.s32.totalorder %s23, 0
    %p64 = por %p62, %p63
    %s66 = sadd.s32 %s65, 1
    %p69 = scmp.eq.s32.totalorder %s17, 1
    %p70 = scmp.ne.s32.totalorder %s65, %s67
    %p71 = scmp.eq.s32.totalorder %s17, 0
    %p72 = por %p70, %p71
    %p73 = scmp.ne.s32.totalorder %s65, %s67
    %p74 = scmp.eq.s32.totalorder %s22, 1
    %p75 = por %p73, %p74
    %p76 = scmp.ne.s32.totalorder %s67, %s68
    %p77 = scmp.eq.s32.totalorder %s22, 0
    %p78 = por %p76, %p77
    %p79 = scmp.ne.s32.totalorder %s67, %s68
    %p80 = scmp.eq.s32.totalorder %s23, 1
    %p81 = por %p79, %p80
    %p83 = scmp.ne.s32.totalorder %s68, %s82
    %p84 = scmp.eq.s32.totalorder %s23, 0
    %p85 = por %p83, %p84
    %s87 = sadd.s32 %s86, 1
    %p90 = scmp.eq.s32.totalorder %s17, 1
    %p91 = scmp.ne.s32.totalorder %s86, %s88
    %p92 = scmp.eq.s32.totalorder %s17, 0
    %p93 = por %p91, %p92
    %p94 = scmp.ne.s32.totalorder %s86, %s88
    %p95 = scmp.eq.s32.totalorder %s22, 1
    %p96 = por %p94, %p95
    %p97 = scmp.ne.s32.totalorder %s88, %s89
    %p98 = scmp.eq.s32.totalorder %s22, 0
    %p99 = por %p97, %p98
    %p100 = scmp.ne.s32.totalorder %s88, %s89
    %p101 = scmp.eq.s32.totalorder %s23, 1
    %p102 = por %p100, %p101
    %p104 = scmp.ne.s32.totalorder %s89, %s103
    %p105 = scmp.eq.s32.totalorder %s23, 0
    %p106 = por %p104, %p105
    %s108 = sadd.s32 %s107, 1
    %p111 = scmp.eq.s32.totalorder %s17, 1
    %p112 = scmp.ne.s32.totalorder %s107, %s109
    %p113 = scmp.eq.s32.totalorder %s17, 0
    %p114 = por %p112, %p113
    %p115 = scmp.ne.s32.totalorder %s107, %s109
    %p116 = scmp.eq.s32.totalorder %s22, 1
    %p117 = por %p115, %p116
    %p118 = scmp.ne.s32.totalorder %s109, %s110
    %p119 = scmp.eq.s32.totalorder %s22, 0
    %p120 = por %p118, %p119
    %p121 = scmp.ne.s32.totalorder %s109, %s110
    %p122 = scmp.eq.s32.totalorder %s23, 1
    %p123 = por %p121, %p122
    %p125 = scmp.ne.s32.totalorder %s110, %s124
    %p126 = scmp.eq.s32.totalorder %s23, 0
    %p127 = por %p125, %p126
    %s129 = sadd.s32 %s128, 1
    %p132 = scmp.eq.s32.totalorder %s17, 1
    %p133 = scmp.ne.s32.totalorder %s128, %s130
    %p134 = scmp.eq.s32.totalorder %s17, 0
    %p135 = por %p133, %p134
    %p136 = scmp.ne.s32.totalorder %s128, %s130
    %p137 = scmp.eq.s32.totalorder %s22, 1
    %p138 = por %p136, %p137
    %p139 = scmp.ne.s32.totalorder %s130, %s131
    %p140 = scmp.eq.s32.totalorder %s22, 0
    %p141 = por %p139, %p140
    %p142 = scmp.ne.s32.totalorder %s130, %s131
    %p143 = scmp.eq.s32.totalorder %s23, 1
    %p144 = por %p142, %p143
    %p146 = scmp.ne.s32.totalorder %s131, %s145
    %p147 = scmp.eq.s32.totalorder %s23, 0
    %p148 = por %p146, %p147
    %s150 = sadd.s32 %s149, 1
    %p153 = scmp.eq.s32.totalorder %s17, 1
    %p154 = scmp.ne.s32.totalorder %s149, %s151
    %p155 = scmp.eq.s32.totalorder %s17, 0
    %p156 = por %p154, %p155
    %p157 = scmp.ne.s32.totalorder %s149, %s151
    %p158 = scmp.eq.s32.totalorder %s22, 1
    %p159 = por %p157, %p158
    %p160 = scmp.ne.s32.totalorder %s151, %s152
    %p161 = scmp.eq.s32.totalorder %s22, 0
    %p162 = por %p160, %p161
    %p163 = scmp.ne.s32.totalorder %s151, %s152
    %p164 = scmp.eq.s32.totalorder %s23, 1
    %p165 = por %p163, %p164
    %p167 = scmp.ne.s32.totalorder %s152, %s166
    %p168 = scmp.eq.s32.totalorder %s23, 0
    %p169 = por %p167, %p168
    %s171 = sadd.s32 %s170, 1
    %p174 = scmp.eq.s32.totalorder %s17, 1
    %p175 = scmp.ne.s32.totalorder %s170, %s172
    %p176 = scmp.eq.s32.totalorder %s17, 0
    %p177 = por %p175, %p176
    %p178 = scmp.ne.s32.totalorder %s170, %s172
    %p179 = scmp.eq.s32.totalorder %s22, 1
    %p180 = por %p178, %p179
    %p181 = scmp.ne.s32.totalorder %s172, %s173
    %p182 = scmp.eq.s32.totalorder %s22, 0
    %p183 = por %p181, %p182
    %p184 = scmp.ne.s32.totalorder %s172, %s173
    %p185 = scmp.eq.s32.totalorder %s23, 1
    %p186 = por %p184, %p185
    %p188 = scmp.ne.s32.totalorder %s173, %s187
    %p189 = scmp.eq.s32.totalorder %s23, 0
    %p190 = por %p188, %p189
    %s192 = sadd.s32 %s191, 1
    %p195 = scmp.eq.s32.totalorder %s17, 1
    %p196 = scmp.ne.s32.totalorder %s191, %s193
    %p197 = scmp.eq.s32.totalorder %s17, 0
    %p198 = por %p196, %p197
    %p199 = scmp.ne.s32.totalorder %s191, %s193
    %p200 = scmp.eq.s32.totalorder %s22, 1
    %p201 = por %p199, %p200
    %p202 = scmp.ne.s32.totalorder %s193, %s194
    %p203 = scmp.eq.s32.totalorder %s22, 0
    %p204 = por %p202, %p203
    %p205 = scmp.ne.s32.totalorder %s193, %s194
    %p206 = scmp.eq.s32.totalorder %s23, 1
    %p207 = por %p205, %p206
    %p209 = scmp.ne.s32.totalorder %s194, %s208
    %p210 = scmp.eq.s32.totalorder %s23, 0
    %p211 = por %p209, %p210
    %s213 = sadd.s32 %s212, 1
    %p216 = scmp.eq.s32.totalorder %s17, 1
    %p217 = scmp.ne.s32.totalorder %s212, %s214
    %p218 = scmp.eq.s32.totalorder %s17, 0
    %p219 = por %p217, %p218
    %p220 = scmp.ne.s32.totalorder %s212, %s214
    %p221 = scmp.eq.s32.totalorder %s22, 1
    %p222 = por %p220, %p221
    %p223 = scmp.ne.s32.totalorder %s214, %s215
    %p224 = scmp.eq.s32.totalorder %s22, 0
    %p225 = por %p223, %p224
    %p226 = scmp.ne.s32.totalorder %s214, %s215
    %p227 = scmp.eq.s32.totalorder %s23, 1
    %p228 = por %p226, %p227
    %p230 = scmp.ne.s32.totalorder %s215, %s229
    %p231 = scmp.eq.s32.totalorder %s23, 0
    %p232 = por %p230, %p231
    %s234 = sadd.s32 %s233, 1
    %p237 = scmp.eq.s32.totalorder %s17, 1
    %p238 = scmp.ne.s32.totalorder %s233, %s235
    %p239 = scmp.eq.s32.totalorder %s17, 0
    %p240 = por %p238, %p239
    %p241 = scmp.ne.s32.totalorder %s233, %s235
    %p242 = scmp.eq.s32.totalorder %s22, 1
    %p243 = por %p241, %p242
    %p244 = scmp.ne.s32.totalorder %s235, %s236
    %p245 = scmp.eq.s32.totalorder %s22, 0
    %p246 = por %p244, %p245
    %p247 = scmp.ne.s32.totalorder %s235, %s236
    %p248 = scmp.eq.s32.totalorder %s23, 1
    %p249 = por %p247, %p248
    %p251 = scmp.ne.s32.totalorder %s236, %s250
    %p252 = scmp.eq.s32.totalorder %s23, 0
    %p253 = por %p251, %p252
    %s255 = sadd.s32 %s254, 1
    %p258 = scmp.eq.s32.totalorder %s17, 1
    %p259 = scmp.ne.s32.totalorder %s254, %s256
    %p260 = scmp.eq.s32.totalorder %s17, 0
    %p261 = por %p259, %p260
    %p262 = scmp.ne.s32.totalorder %s254, %s256
    %p263 = scmp.eq.s32.totalorder %s22, 1
    %p264 = por %p262, %p263
    %p265 = scmp.ne.s32.totalorder %s256, %s257
    %p266 = scmp.eq.s32.totalorder %s22, 0
    %p267 = por %p265, %p266
    %p268 = scmp.ne.s32.totalorder %s256, %s257
    %p269 = scmp.eq.s32.totalorder %s23, 1
    %p270 = por %p268, %p269
    %p272 = scmp.ne.s32.totalorder %s257, %s271
    %p273 = scmp.eq.s32.totalorder %s23, 0
    %p274 = por %p272, %p273
    %p275 = scmp.le.s32.totalorder 1, %s17
    %p276 = scmp.lt.s32.totalorder %s17, 3
    %p277 = pnand %p275, %p276
    %p278 = pneg %p277
    // Predicated region
    $region9: #{backbone_forward.1} parent=5 // pred_check
      _
    $region10: #{backbone_forward.1} parent=5 // pred_check_branch
      %280 = sbr.rel (%p277) target = $region12
    $region11: #{backbone_forward.1} parent=5 // pred_region
      %s281 = ssub.s32 %s17, 1
      // Predicated region
      $region13: #{backbone_forward.1} parent=11 // pred_check
        %p282 = pneg %p78
      $region14: #{backbone_forward.1} parent=11 // pred_check_branch
        %284 = sbr.rel (%p282) target = $region16
      $region15: #{backbone_forward.1} parent=11 // pred_region
        _
      $region16: #{backbone_forward.1} parent=11 // pred_fallthru
        _
      // Predicated region
      $region17: #{backbone_forward.1} parent=11 // pred_check
        %p285 = pneg %p99
      $region18: #{backbone_forward.1} parent=11 // pred_check_branch
        %287 = sbr.rel (%p285) target = $region20
      $region19: #{backbone_forward.1} parent=11 // pred_region
        _
      $region20: #{backbone_forward.1} parent=11 // pred_fallthru
        _
      // Predicated region
      $region21: #{backbone_forward.1} parent=11 // pred_check
        %p288 = pneg %p120
      $region22: #{backbone_forward.1} parent=11 // pred_check_branch
        %290 = sbr.rel (%p288) target = $region24
      $region23: #{backbone_forward.1} parent=11 // pred_region
        _
      $region24: #{backbone_forward.1} parent=11 // pred_fallthru
        _
      // Predicated region
      $region25: #{backbone_forward.1} parent=11 // pred_check
        %p291 = pneg %p141
      $region26: #{backbone_forward.1} parent=11 // pred_check_branch
        %293 = sbr.rel (%p291) target = $region28
      $region27: #{backbone_forward.1} parent=11 // pred_region
        _
      $region28: #{backbone_forward.1} parent=11 // pred_fallthru
        _
      // Predicated region
      $region29: #{backbone_forward.1} parent=11 // pred_check
        %p294 = pneg %p162
      $region30: #{backbone_forward.1} parent=11 // pred_check_branch
        %296 = sbr.rel (%p294) target = $region32
      $region31: #{backbone_forward.1} parent=11 // pred_region
        _
      $region32: #{backbone_forward.1} parent=11 // pred_fallthru
        _
      // Predicated region
      $region33: #{backbone_forward.1} parent=11 // pred_check
        %p297 = pneg %p183
      $region34: #{backbone_forward.1} parent=11 // pred_check_branch
        %299 = sbr.rel (%p297) target = $region36
      $region35: #{backbone_forward.1} parent=11 // pred_region
        _
      $region36: #{backbone_forward.1} parent=11 // pred_fallthru
        _
      // Predicated region
      $region37: #{backbone_forward.1} parent=11 // pred_check
        %p300 = pneg %p204
      $region38: #{backbone_forward.1} parent=11 // pred_check_branch
        %302 = sbr.rel (%p300) target = $region40
      $region39: #{backbone_forward.1} parent=11 // pred_region
        _
      $region40: #{backbone_forward.1} parent=11 // pred_fallthru
        _
      // Predicated region
      $region41: #{backbone_forward.1} parent=11 // pred_check
        %p303 = pneg %p225
      $region42: #{backbone_forward.1} parent=11 // pred_check_branch
        %305 = sbr.rel (%p303) target = $region44
      $region43: #{backbone_forward.1} parent=11 // pred_region
        _
      $region44: #{backbone_forward.1} parent=11 // pred_fallthru
        _
    $region12: #{backbone_forward.1} parent=5 // pred_fallthru
      _
    %p306 = scmp.lt.s32.totalorder %s17, 2
    // Predicated region
    $region45: #{backbone_forward.1} parent=5 // pred_check
      %p307 = pneg %p306
    $region46: #{backbone_forward.1} parent=5 // pred_check_branch
      %309 = sbr.rel (%p307) target = $region48
    $region47: #{backbone_forward.1} parent=5 // pred_region
      // Predicated region
      $region49: #{backbone_forward.1} parent=47 // pred_check
        %p310 = pneg %p51
      $region50: #{backbone_forward.1} parent=47 // pred_check_branch
        %312 = sbr.rel (%p310) target = $region52
      $region51: #{backbone_forward.1} parent=47 // pred_region
        %s313 = sadd.s32 %s24, %s25
        %s314 = smul.u32 32, %s313
        %p315 = scmp.lt.s32.totalorder %s314, 63
        %s316 = scalar_select %p315, %s314, 63
        %s317 = smul.addr %s316, 4
        %s318 = scalar_lea.vmem %s0, %s317
        %s319 = sadd.s32 %s24, %s25
        %s320 = smul.u32 32, %s319
      $region52: #{backbone_forward.1} parent=47 // pred_fallthru
        _
    $region48: #{backbone_forward.1} parent=5 // pred_fallthru
      _
    %p321 = scmp.le.s32.totalorder 1, %s17
    %p322 = scmp.lt.s32.totalorder %s17, 3
    %p323 = pnand %p321, %p322
    %p324 = pneg %p323
    // Predicated region
    $region53: #{backbone_forward.1} parent=5 // pred_check
      _
    $region54: #{backbone_forward.1} parent=5 // pred_check_branch
      %326 = sbr.rel (%p323) target = $region56
    $region55: #{backbone_forward.1} parent=5 // pred_region
      %s327 = ssub.s32 %s17, 1
      %s328 = sadd.s32 %s26, %s27
      %s329 = smul.u32 32, %s328
      %p330 = scmp.lt.s32.totalorder %s329, 63
      %s331 = scalar_select %p330, %s329, 63
      %s332 = smul.addr %s331, 4
      %s333 = scalar_lea.vmem %s0, %s332
      %p334 = pneg %p57
      %p335 = pneg %p54
      %p336 = pneg %p78
      %p337 = pneg %p75
      %p338 = pneg %p99
      %p339 = pneg %p96
      %p340 = pneg %p120
      %p341 = pneg %p117
      %p342 = pneg %p141
      %p343 = pneg %p138
      %p344 = pneg %p162
      %p345 = pneg %p159
      %p346 = pneg %p183
      %p347 = pneg %p180
      %p348 = pneg %p204
      %p349 = pneg %p201
      %p350 = pneg %p225
      %p351 = pneg %p222
      %p352 = pneg %p246
      %p353 = pneg %p243
      %p354 = pneg %p267
      %p355 = pneg %p264
      %s356 = sadd.s32 %s26, %s27
      %s357 = smul.u32 32, %s356
      %p358 = scmp.lt.s32.totalorder %s357, 63
      %s359 = scalar_select %p358, %s357, 63
      %s360 = smul.addr %s359, 4
      %s361 = scalar_lea.vmem %s0, %s360
      %s362 = sadd.s32 %s26, %s27
      %s363 = smul.u32 32, %s362
      %p365 = scmp.eq.s32.totalorder %s26, 0
      %p366 = scmp.eq.s32.totalorder %s27, 0
      %p367 = pnand %p365, %p366
      %p368 = pneg %p367
      // Predicated region
      $region57: #{backbone_forward.1} parent=55 // pred_check
        _
      $region58: #{backbone_forward.1} parent=55 // pred_check_branch
        %370 = sbr.rel (%p367) target = $region60
      $region59: #{backbone_forward.1} parent=55 // pred_region
        %371 = vst [vmem:[#allocation3] sm:$0xff] 0.0
      $region60: #{backbone_forward.1} parent=55 // pred_fallthru
        _
      // Predicated region
      $region61: #{backbone_forward.1} parent=55 // pred_check
        %p372 = pneg %p366
      $region62: #{backbone_forward.1} parent=55 // pred_check_branch
        %374 = sbr.rel (%p372) target = $region64
      $region63: #{backbone_forward.1} parent=55 // pred_region
        %375 = vst [vmem:[#allocation2] sm:$0xff] 0.0
      $region64: #{backbone_forward.1} parent=55 // pred_fallthru
        _
      %v376 = vld [vmem:[%s361] sm:$0xf]
      %v377 = vld [vmem:[%s361 + $0x4] sm:$0xf]
      %v378 = vld [vmem:[%s361 + $0x8] sm:$0xf]
      %v379 = vld [vmem:[%s361 + $0xc] sm:$0xf]
      %v380 = vld [vmem:[%s361 + $0x10] sm:$0xf]
      %v381 = vld [vmem:[%s361 + $0x14] sm:$0xf]
      %v382 = vld [vmem:[%s361 + $0x18] sm:$0xf]
      %v383 = vld [vmem:[%s361 + $0x1c] sm:$0xf]
      %v384 = vld [vmem:[%s361 + $0x20] sm:$0xf]
      %v385 = vld [vmem:[%s361 + $0x24] sm:$0xf]
      %v386 = vld [vmem:[%s361 + $0x28] sm:$0xf]
      %v387 = vld [vmem:[%s361 + $0x2c] sm:$0xf]
      %v388 = vld [vmem:[%s361 + $0x30] sm:$0xf]
      %v389 = vld [vmem:[%s361 + $0x34] sm:$0xf]
      %v390 = vld [vmem:[%s361 + $0x38] sm:$0xf]
      %v391 = vld [vmem:[%s361 + $0x3c] sm:$0xf]
      %v392 = vld [vmem:[%s361 + $0x40] sm:$0xf]
      %v393 = vld [vmem:[%s361 + $0x44] sm:$0xf]
      %v394 = vld [vmem:[%s361 + $0x48] sm:$0xf]
      %v395 = vld [vmem:[%s361 + $0x4c] sm:$0xf]
      %v396 = vld [vmem:[%s361 + $0x50] sm:$0xf]
      %v397 = vld [vmem:[%s361 + $0x54] sm:$0xf]
      %v398 = vld [vmem:[%s361 + $0x58] sm:$0xf]
      %v399 = vld [vmem:[%s361 + $0x5c] sm:$0xf]
      %v400 = vld [vmem:[%s361 + $0x60] sm:$0xf]
      %v401 = vld [vmem:[%s361 + $0x64] sm:$0xf]
      %v402 = vld [vmem:[%s361 + $0x68] sm:$0xf]
      %v403 = vld [vmem:[%s361 + $0x6c] sm:$0xf]
      %v404 = vld [vmem:[%s361 + $0x70] sm:$0xf]
      %v405 = vld [vmem:[%s361 + $0x74] sm:$0xf]
      %v406 = vld [vmem:[%s361 + $0x78] sm:$0xf]
      %v407 = vld [vmem:[%s361 + $0x7c] sm:$0xf]
      %v408 = vld [vmem:[%s1] sm:$0xf]
      %v409 = vld [vmem:[%s1 + $0x4] sm:$0xf]
      %v410 = vld [vmem:[%s1 + $0x8] sm:$0xf]
      %v411 = vld [vmem:[%s1 + $0xc] sm:$0xf]
      %v412 = vld [vmem:[%s1 + $0x10] sm:$0x3]
      %v413 = vld [vmem:[%s2] sm:$0x1]
      %v415 = vlaneseq
      %v416 = vshrl.u32 %v415, 7
      %v417 = vsub.s32 0, %v416
      %v418 = vrot.slane %v413, %v417
      %v452 = vunpack.c.l.b16 %v376
      %v453 = vunpack.c.l.b16 %v377
      %v454 = vunpack.c.l.b16 %v378
      %v455 = vunpack.c.l.b16 %v379
      %v456 = vunpack.c.l.b16 %v380
      %v457 = vunpack.c.l.b16 %v381
      %v458 = vunpack.c.l.b16 %v382
      %v459 = vunpack.c.l.b16 %v383
      %v460 = vunpack.c.l.b16 %v384
      %v461 = vunpack.c.l.b16 %v385
      %v462 = vunpack.c.l.b16 %v386
      %v463 = vunpack.c.l.b16 %v387
      %v464 = vunpack.c.l.b16 %v388
      %v465 = vunpack.c.l.b16 %v389
      %v466 = vunpack.c.l.b16 %v390
      %v467 = vunpack.c.l.b16 %v391
      %v468 = vunpack.c.l.b16 %v392
      %v469 = vunpack.c.l.b16 %v393
      %v470 = vunpack.c.l.b16 %v394
      %v471 = vunpack.c.l.b16 %v395
      %v472 = vunpack.c.l.b16 %v396
      %v473 = vunpack.c.l.b16 %v397
      %v474 = vunpack.c.l.b16 %v398
      %v475 = vunpack.c.l.b16 %v399
      %v476 = vunpack.c.l.b16 %v400
      %v477 = vunpack.c.l.b16 %v401
      %v478 = vunpack.c.l.b16 %v402
      %v479 = vunpack.c.l.b16 %v403
      %v480 = vunpack.c.l.b16 %v404
      %v481 = vunpack.c.l.b16 %v405
      %v482 = vunpack.c.l.b16 %v406
      %v483 = vunpack.c.l.b16 %v407
      %v484 = vpack.c.b16 %v453, %v452
      %v485 = vpack.c.b16 %v455, %v454
      %v486 = vpack.c.b16 %v457, %v456
      %v487 = vpack.c.b16 %v459, %v458
      %v488 = vpack.c.b16 %v461, %v460
      %v489 = vpack.c.b16 %v463, %v462
      %v490 = vpack.c.b16 %v465, %v464
      %v491 = vpack.c.b16 %v467, %v466
      %v492 = vpack.c.b16 %v469, %v468
      %v493 = vpack.c.b16 %v471, %v470
      %v494 = vpack.c.b16 %v473, %v472
      %v495 = vpack.c.b16 %v475, %v474
      %v496 = vpack.c.b16 %v477, %v476
      %v497 = vpack.c.b16 %v479, %v478
      %v498 = vpack.c.b16 %v481, %v480
      %v499 = vpack.c.b16 %v483, %v482
      %v505 = vunpack.c.l.b16 %v408
      %v506 = vunpack.c.l.b16 %v409
      %v507 = vunpack.c.l.b16 %v410
      %v508 = vunpack.c.l.b16 %v411
      %v509 = vunpack.c.l.b16 %v412
      %v510 = vpack.c.b16 %v506, %v505
      %v511 = vpack.c.b16 %v508, %v507
      %v512 = vpack.c.b16 %v509, %v509
      %vm515 = vcmask 293888
      %v517 = vsel %vm515, %v484, 0
      %v520 = vsel %vm515, %v485, 0
      %v523 = vsel %vm515, %v486, 0
      %v526 = vsel %vm515, %v487, 0
      %v529 = vsel %vm515, %v488, 0
      %v532 = vsel %vm515, %v489, 0
      %v535 = vsel %vm515, %v490, 0
      %v538 = vsel %vm515, %v491, 0
      %v541 = vsel %vm515, %v492, 0
      %v544 = vsel %vm515, %v493, 0
      %v547 = vsel %vm515, %v494, 0
      %v550 = vsel %vm515, %v495, 0
      %v553 = vsel %vm515, %v496, 0
      %v556 = vsel %vm515, %v497, 0
      %v559 = vsel %vm515, %v498, 0
      %v562 = vsel %vm515, %v499, 0
      %vm564 = vcmask 1041408
      %v566 = vsel %vm564, %v512, 0
      %568 = vmatprep.subr.bf16.mxu0 0
      %569 = vmatpush1.bf16.msra.mxu0 0
      %570 = vmatprep.subr.bf16.mxu0 0
      %571 = vmatpush1.bf16.msra.mxu0 0
      %572 = vmatprep.subr.bf16.mxu0 0
      %573 = vmatpush1.bf16.msra.mxu0 0
      %574 = vmatprep.subr.bf16.mxu0 0
      %575 = vmatpush1.bf16.msra.mxu0 0
      %576 = vmatprep.subr.bf16.mxu0 0
      %577 = vmatpush1.bf16.msra.mxu0 0
      %578 = vmatprep.subr.bf16.mxu0 0
      %579 = vmatpush1.bf16.msra.mxu0 %v566
      %580 = vmatprep.subr.bf16.mxu0 0
      %581 = vmatpush1.bf16.msra.mxu0 %v511
      %582 = vmatprep.subr.bf16.mxu0 0
      %583 = vmatpush1.bf16.msra.mxu0 %v510
      %584 = vmatprep.subr.bf16.mxu0 0
      %585 = vmatpush2.bf16.msra.mxu0 0
      %586 = vmatprep.subr.bf16.mxu0 0
      %587 = vmatpush2.bf16.msra.mxu0 0
      %588 = vmatprep.subr.bf16.mxu0 0
      %589 = vmatpush2.bf16.msra.mxu0 0
      %590 = vmatprep.subr.bf16.mxu0 0
      %591 = vmatpush2.bf16.msra.mxu0 0
      %592 = vmatprep.subr.bf16.mxu0 0
      %593 = vmatpush2.bf16.msra.mxu0 0
      %594 = vmatprep.subr.bf16.mxu0 0
      %595 = vmatpush2.bf16.msra.mxu0 0
      %596 = vmatprep.subr.bf16.mxu0 0
      %597 = vmatpush2.bf16.msra.mxu0 0
      %598 = vmatprep.subr.bf16.mxu0 0
      %599 = vmatpush2.bf16.msra.mxu0 0
      %600 = vmatprep.mubr.bf16.mxu0 0
      %601 = vmatmul.mubr.bf16.gmra.mxu0 %v517
      %v602 = vpop.f32.mrf.mxu0
      %v603 = vadd.f32 %v418, %v602
      %v604 = vpop.f32.mrf.mxu0
      %v605 = vpop.f32.mrf.mxu0
      %v606 = vadd.f32 %v418, %v605
      %v607 = vpop.f32.mrf.mxu0
      %608 = vmatprep.mubr.bf16.mxu0 0
      %609 = vmatmul.mubr.bf16.gmra.mxu0 %v520
      %v610 = vpop.f32.mrf.mxu0
      %v611 = vadd.f32 %v418, %v610
      %v612 = vpop.f32.mrf.mxu0
      %v613 = vpop.f32.mrf.mxu0
      %v614 = vadd.f32 %v418, %v613
      %v615 = vpop.f32.mrf.mxu0
      %616 = vmatprep.mubr.bf16.mxu0 0
      %617 = vmatmul.mubr.bf16.gmra.mxu0 %v523
      %v618 = vpop.f32.mrf.mxu0
      %v619 = vadd.f32 %v418, %v618
      %v620 = vpop.f32.mrf.mxu0
      %v621 = vpop.f32.mrf.mxu0
      %v622 = vadd.f32 %v418, %v621
      %v623 = vpop.f32.mrf.mxu0
      %624 = vmatprep.mubr.bf16.mxu0 0
      %625 = vmatmul.mubr.bf16.gmra.mxu0 %v526
      %v626 = vpop.f32.mrf.mxu0
      %v627 = vadd.f32 %v418, %v626
      %v628 = vpop.f32.mrf.mxu0
      %v629 = vpop.f32.mrf.mxu0
      %v630 = vadd.f32 %v418, %v629
      %v631 = vpop.f32.mrf.mxu0
      %632 = vmatprep.mubr.bf16.mxu0 0
      %633 = vmatmul.mubr.bf16.gmra.mxu0 %v529
      %v634 = vpop.f32.mrf.mxu0
      %v635 = vadd.f32 %v418, %v634
      %v636 = vpop.f32.mrf.mxu0
      %v637 = vpop.f32.mrf.mxu0
      %v638 = vadd.f32 %v418, %v637
      %v639 = vpop.f32.mrf.mxu0
      %640 = vmatprep.mubr.bf16.mxu0 0
      %641 = vmatmul.mubr.bf16.gmra.mxu0 %v532
      %v642 = vpop.f32.mrf.mxu0
      %v643 = vadd.f32 %v418, %v642
      %v644 = vpop.f32.mrf.mxu0
      %v645 = vpop.f32.mrf.mxu0
      %v646 = vadd.f32 %v418, %v645
      %v647 = vpop.f32.mrf.mxu0
      %648 = vmatprep.mubr.bf16.mxu0 0
      %649 = vmatmul.mubr.bf16.gmra.mxu0 %v535
      %v650 = vpop.f32.mrf.mxu0
      %v651 = vadd.f32 %v418, %v650
      %v652 = vpop.f32.mrf.mxu0
      %v653 = vpop.f32.mrf.mxu0
      %v654 = vadd.f32 %v418, %v653
      %v655 = vpop.f32.mrf.mxu0
      %656 = vmatprep.mubr.bf16.mxu0 0
      %657 = vmatmul.mubr.bf16.gmra.mxu0 %v538
      %v658 = vpop.f32.mrf.mxu0
      %v659 = vadd.f32 %v418, %v658
      %v660 = vpop.f32.mrf.mxu0
      %v661 = vpop.f32.mrf.mxu0
      %v662 = vadd.f32 %v418, %v661
      %v663 = vpop.f32.mrf.mxu0
      %664 = vmatprep.mubr.bf16.mxu0 0
      %665 = vmatmul.mubr.bf16.gmra.mxu0 %v541
      %v666 = vpop.f32.mrf.mxu0
      %v667 = vadd.f32 %v418, %v666
      %v668 = vpop.f32.mrf.mxu0
      %v669 = vpop.f32.mrf.mxu0
      %v670 = vadd.f32 %v418, %v669
      %v671 = vpop.f32.mrf.mxu0
      %672 = vmatprep.mubr.bf16.mxu0 0
      %673 = vmatmul.mubr.bf16.gmra.mxu0 %v544
      %v674 = vpop.f32.mrf.mxu0
      %v675 = vadd.f32 %v418, %v674
      %v676 = vpop.f32.mrf.mxu0
      %v677 = vpop.f32.mrf.mxu0
      %v678 = vadd.f32 %v418, %v677
      %v679 = vpop.f32.mrf.mxu0
      %680 = vmatprep.mubr.bf16.mxu0 0
      %681 = vmatmul.mubr.bf16.gmra.mxu0 %v547
      %v682 = vpop.f32.mrf.mxu0
      %v683 = vadd.f32 %v418, %v682
      %v684 = vpop.f32.mrf.mxu0
      %v685 = vpop.f32.mrf.mxu0
      %v686 = vadd.f32 %v418, %v685
      %v687 = vpop.f32.mrf.mxu0
      %688 = vmatprep.mubr.bf16.mxu0 0
      %689 = vmatmul.mubr.bf16.gmra.mxu0 %v550
      %v690 = vpop.f32.mrf.mxu0
      %v691 = vadd.f32 %v418, %v690
      %v692 = vpop.f32.mrf.mxu0
      %v693 = vpop.f32.mrf.mxu0
      %v694 = vadd.f32 %v418, %v693
      %v695 = vpop.f32.mrf.mxu0
      %696 = vmatprep.mubr.bf16.mxu0 0
      %697 = vmatmul.mubr.bf16.gmra.mxu0 %v553
      %v698 = vpop.f32.mrf.mxu0
      %v699 = vadd.f32 %v418, %v698
      %v700 = vpop.f32.mrf.mxu0
      %v701 = vpop.f32.mrf.mxu0
      %v702 = vadd.f32 %v418, %v701
      %v703 = vpop.f32.mrf.mxu0
      %704 = vmatprep.mubr.bf16.mxu0 0
      %705 = vmatmul.mubr.bf16.gmra.mxu0 %v556
      %v706 = vpop.f32.mrf.mxu0
      %v707 = vadd.f32 %v418, %v706
      %v708 = vpop.f32.mrf.mxu0
      %v709 = vpop.f32.mrf.mxu0
      %v710 = vadd.f32 %v418, %v709
      %v711 = vpop.f32.mrf.mxu0
      %712 = vmatprep.mubr.bf16.mxu0 0
      %713 = vmatmul.mubr.bf16.gmra.mxu0 %v559
      %v714 = vpop.f32.mrf.mxu0
      %v715 = vadd.f32 %v418, %v714
      %v716 = vpop.f32.mrf.mxu0
      %v717 = vpop.f32.mrf.mxu0
      %v718 = vadd.f32 %v418, %v717
      %v719 = vpop.f32.mrf.mxu0
      %720 = vmatprep.mubr.bf16.mxu0 0
      %721 = vmatmul.mubr.bf16.gmra.mxu0 %v562
      %v722 = vpop.f32.mrf.mxu0
      %v723 = vadd.f32 %v418, %v722
      %v724 = vpop.f32.mrf.mxu0
      %v725 = vpop.f32.mrf.mxu0
      %v726 = vadd.f32 %v418, %v725
      %v727 = vpop.f32.mrf.mxu0
      %728 = vdwg.mxu0
      %v729 = vmax.f32 %v603, 0.0
      %v730 = vmax.f32 %v606, 0.0
      %v731 = vmax.f32 %v611, 0.0
      %v732 = vmax.f32 %v614, 0.0
      %v733 = vmax.f32 %v619, 0.0
      %v734 = vmax.f32 %v622, 0.0
      %v735 = vmax.f32 %v627, 0.0
      %v736 = vmax.f32 %v630, 0.0
      %v737 = vmax.f32 %v635, 0.0
      %v738 = vmax.f32 %v638, 0.0
      %v739 = vmax.f32 %v643, 0.0
      %v740 = vmax.f32 %v646, 0.0
      %v741 = vmax.f32 %v651, 0.0
      %v742 = vmax.f32 %v654, 0.0
      %v743 = vmax.f32 %v659, 0.0
      %v744 = vmax.f32 %v662, 0.0
      %v745 = vmax.f32 %v667, 0.0
      %v746 = vmax.f32 %v670, 0.0
      %v747 = vmax.f32 %v675, 0.0
      %v748 = vmax.f32 %v678, 0.0
      %v749 = vmax.f32 %v683, 0.0
      %v750 = vmax.f32 %v686, 0.0
      %v751 = vmax.f32 %v691, 0.0
      %v752 = vmax.f32 %v694, 0.0
      %v753 = vmax.f32 %v699, 0.0
      %v754 = vmax.f32 %v702, 0.0
      %v755 = vmax.f32 %v707, 0.0
      %v756 = vmax.f32 %v710, 0.0
      %v757 = vmax.f32 %v715, 0.0
      %v758 = vmax.f32 %v718, 0.0
      %v759 = vmax.f32 %v723, 0.0
      %v760 = vmax.f32 %v726, 0.0
      %v761 = vld [vmem:[#allocation2] sm:$0xff]
      %762 = vmatprep.subr.mxu0 0.0
      %763 = vmatpush1.msra.mxu0 %v744
      %764 = vmatprep.subr.mxu0 0.0
      %765 = vmatpush1.msra.mxu0 %v743
      %766 = vmatprep.subr.mxu0 0.0
      %767 = vmatpush1.msra.mxu0 %v742
      %768 = vmatprep.subr.mxu0 0.0
      %769 = vmatpush1.msra.mxu0 %v741
      %770 = vmatprep.subr.mxu0 0.0
      %771 = vmatpush1.msra.mxu0 %v740
      %772 = vmatprep.subr.mxu0 0.0
      %773 = vmatpush1.msra.mxu0 %v739
      %774 = vmatprep.subr.mxu0 0.0
      %775 = vmatpush1.msra.mxu0 %v738
      %776 = vmatprep.subr.mxu0 0.0
      %777 = vmatpush1.msra.mxu0 %v737
      %778 = vmatprep.subr.mxu0 0.0
      %779 = vmatpush1.msra.mxu0 %v736
      %780 = vmatprep.subr.mxu0 0.0
      %781 = vmatpush1.msra.mxu0 %v735
      %782 = vmatprep.subr.mxu0 0.0
      %783 = vmatpush1.msra.mxu0 %v734
      %784 = vmatprep.subr.mxu0 0.0
      %785 = vmatpush1.msra.mxu0 %v733
      %786 = vmatprep.subr.mxu0 0.0
      %787 = vmatpush1.msra.mxu0 %v732
      %788 = vmatprep.subr.mxu0 0.0
      %789 = vmatpush1.msra.mxu0 %v731
      %790 = vmatprep.subr.mxu0 0.0
      %791 = vmatpush1.msra.mxu0 %v730
      %792 = vmatprep.subr.mxu0 0.0
      %793 = vmatpush1.msra.mxu0 %v729
      %794 = vmatprep.subr.mxu0 0.0
      %795 = vmatpush2.msra.mxu0 %v760
      %796 = vmatprep.subr.mxu0 0.0
      %797 = vmatpush2.msra.mxu0 %v759
      %798 = vmatprep.subr.mxu0 0.0
      %799 = vmatpush2.msra.mxu0 %v758
      %800 = vmatprep.subr.mxu0 0.0
      %801 = vmatpush2.msra.mxu0 %v757
      %802 = vmatprep.subr.mxu0 0.0
      %803 = vmatpush2.msra.mxu0 %v756
      %804 = vmatprep.subr.mxu0 0.0
      %805 = vmatpush2.msra.mxu0 %v755
      %806 = vmatprep.subr.mxu0 0.0
      %807 = vmatpush2.msra.mxu0 %v754
      %808 = vmatprep.subr.mxu0 0.0
      %809 = vmatpush2.msra.mxu0 %v753
      %810 = vmatprep.subr.mxu0 0.0
      %811 = vmatpush2.msra.mxu0 %v752
      %812 = vmatprep.subr.mxu0 0.0
      %813 = vmatpush2.msra.mxu0 %v751
      %814 = vmatprep.subr.mxu0 0.0
      %815 = vmatpush2.msra.mxu0 %v750
      %816 = vmatprep.subr.mxu0 0.0
      %817 = vmatpush2.msra.mxu0 %v749
      %818 = vmatprep.subr.mxu0 0.0
      %819 = vmatpush2.msra.mxu0 %v748
      %820 = vmatprep.subr.mxu0 0.0
      %821 = vmatpush2.msra.mxu0 %v747
      %822 = vmatprep.subr.mxu0 0.0
      %823 = vmatpush2.msra.mxu0 %v746
      %824 = vmatprep.subr.mxu0 0.0
      %825 = vmatpush2.msra.mxu0 %v745
      %826 = vmatprep.mubr.f32.mxu0 1.0
      %827 = vmatmul.mubr.f32.gmra.mxu0 1.0
      %v828 = vpop.f32.mrf.mxu0
      %v829 = vadd.f32 0.0, %v828
      %v830 = vpop.f32.mrf.mxu0
      %831 = vdwg.mxu0
      %v832 = vadd.f32 %v761, %v829
      %833 = vst [vmem:[#allocation2] sm:$0xff] %v832
      // Predicated region
      $region65: #{backbone_forward.1} parent=55 // pred_check
        %p834 = pneg %p366
      $region66: #{backbone_forward.1} parent=55 // pred_check_branch
        %836 = sbr.rel (%p834) target = $region68
      $region67: #{backbone_forward.1} parent=55 // pred_region
        %v837 = vld [vmem:[#allocation2] sm:$0xff]
        %v838 = vmul.f32 %v837, 0.00390625
        %s839 = scalar_lea.vmem [#allocation3], %s26
        %840 = vst [vmem:[%s839] sm:$0x1] %v838
      $region68: #{backbone_forward.1} parent=55 // pred_fallthru
        _
      %p841 = scmp.eq.s32.totalorder %s26, 1
      %p842 = pnand %p841, %p366
      %p843 = pneg %p842
      // Predicated region
      $region69: #{backbone_forward.1} parent=55 // pred_check
        _
      $region70: #{backbone_forward.1} parent=55 // pred_check_branch
        %845 = sbr.rel (%p842) target = $region72
      $region71: #{backbone_forward.1} parent=55 // pred_region
        %v846 = vld [vmem:[#allocation3] sm:$0xff]
        %v847 = vpack.c.bf16 %v846, %v846
        %v848 = vld [vmem:[%s3] sm:$0xf]
        %v849 = vld [vmem:[%s3 + $0x4] sm:$0xf]
        %v850 = vld [vmem:[%s3 + $0x8] sm:$0xf]
        %v851 = vld [vmem:[%s3 + $0xc] sm:$0xf]
        %v852 = vld [vmem:[%s3 + $0x10] sm:$0xf]
        %v853 = vld [vmem:[%s3 + $0x14] sm:$0xf]
        %v854 = vld [vmem:[%s3 + $0x18] sm:$0xf]
        %v855 = vld [vmem:[%s3 + $0x1c] sm:$0xf]
        %v856 = vld [vmem:[%s3 + $0x20] sm:$0xf]
        %v857 = vld [vmem:[%s3 + $0x24] sm:$0xf]
        %v858 = vld [vmem:[%s3 + $0x28] sm:$0xf]
        %v859 = vld [vmem:[%s3 + $0x2c] sm:$0xf]
        %v860 = vld [vmem:[%s3 + $0x30] sm:$0xf]
        %v861 = vld [vmem:[%s3 + $0x34] sm:$0xf]
        %v862 = vld [vmem:[%s3 + $0x38] sm:$0xf]
        %v863 = vld [vmem:[%s3 + $0x3c] sm:$0xf]
        %v864 = vld [vmem:[%s4] sm:$0x1]
        %v866 = vlaneseq
        %v867 = vshrl.u32 %v866, 7
        %v868 = vsub.s32 0, %v867
        %v869 = vrot.slane %v864, %v868
        %v887 = vunpack.c.l.b16 %v848
        %v888 = vunpack.c.l.b16 %v849
        %v889 = vunpack.c.l.b16 %v850
        %v890 = vunpack.c.l.b16 %v851
        %v891 = vunpack.c.l.b16 %v852
        %v892 = vunpack.c.l.b16 %v853
        %v893 = vunpack.c.l.b16 %v854
        %v894 = vunpack.c.l.b16 %v855
        %v895 = vunpack.c.l.b16 %v856
        %v896 = vunpack.c.l.b16 %v857
        %v897 = vunpack.c.l.b16 %v858
        %v898 = vunpack.c.l.b16 %v859
        %v899 = vunpack.c.l.b16 %v860
        %v900 = vunpack.c.l.b16 %v861
        %v901 = vunpack.c.l.b16 %v862
        %v902 = vunpack.c.l.b16 %v863
        %v903 = vpack.c.b16 %v888, %v887
        %v904 = vpack.c.b16 %v890, %v889
        %v905 = vpack.c.b16 %v892, %v891
        %v906 = vpack.c.b16 %v894, %v893
        %v907 = vpack.c.b16 %v896, %v895
        %v908 = vpack.c.b16 %v898, %v897
        %v909 = vpack.c.b16 %v900, %v899
        %v910 = vpack.c.b16 %v902, %v901
        %919 = vmatprep.subr.bf16.mxu0 0
        %920 = vmatpush1.bf16.msra.mxu0 %v910
        %921 = vmatprep.subr.bf16.mxu0 0
        %922 = vmatpush1.bf16.msra.mxu0 %v909
        %923 = vmatprep.subr.bf16.mxu0 0
        %924 = vmatpush1.bf16.msra.mxu0 %v908
        %925 = vmatprep.subr.bf16.mxu0 0
        %926 = vmatpush1.bf16.msra.mxu0 %v907
        %927 = vmatprep.subr.bf16.mxu0 0
        %928 = vmatpush1.bf16.msra.mxu0 %v906
        %929 = vmatprep.subr.bf16.mxu0 0
        %930 = vmatpush1.bf16.msra.mxu0 %v905
        %931 = vmatprep.subr.bf16.mxu0 0
        %932 = vmatpush1.bf16.msra.mxu0 %v904
        %933 = vmatprep.subr.bf16.mxu0 0
        %934 = vmatpush1.bf16.msra.mxu0 %v903
        %935 = vmatprep.subr.bf16.mxu0 0
        %936 = vmatpush2.bf16.msra.mxu0 0
        %937 = vmatprep.subr.bf16.mxu0 0
        %938 = vmatpush2.bf16.msra.mxu0 0
        %939 = vmatprep.subr.bf16.mxu0 0
        %940 = vmatpush2.bf16.msra.mxu0 0
        %941 = vmatprep.subr.bf16.mxu0 0
        %942 = vmatpush2.bf16.msra.mxu0 0
        %943 = vmatprep.subr.bf16.mxu0 0
        %944 = vmatpush2.bf16.msra.mxu0 0
        %945 = vmatprep.subr.bf16.mxu0 0
        %946 = vmatpush2.bf16.msra.mxu0 0
        %947 = vmatprep.subr.bf16.mxu0 0
        %948 = vmatpush2.bf16.msra.mxu0 0
        %949 = vmatprep.subr.bf16.mxu0 0
        %950 = vmatpush2.bf16.msra.mxu0 0
        %951 = vmatprep.mubr.bf16.mxu0 0
        %952 = vmatmul.mubr.bf16.gmra.mxu0 %v847
        %v953 = vpop.f32.mrf.mxu0
        %v954 = vadd.f32 %v869, %v953
        %v955 = vpop.f32.mrf.mxu0
        %v956 = vpop.f32.mrf.mxu0
        %v957 = vpop.f32.mrf.mxu0
        %958 = vdwg.mxu0
        %959 = vst [vmem:[%s9] sm:$0xff] %v954
        %v960 = vld [vmem:[%s5] sm:$0xf]
        %v961 = vld [vmem:[%s5 + $0x4] sm:$0xf]
        %v962 = vld [vmem:[%s5 + $0x8] sm:$0xf]
        %v963 = vld [vmem:[%s5 + $0xc] sm:$0xf]
        %v964 = vld [vmem:[%s5 + $0x10] sm:$0xf]
        %v965 = vld [vmem:[%s5 + $0x14] sm:$0xf]
        %v966 = vld [vmem:[%s5 + $0x18] sm:$0xf]
        %v967 = vld [vmem:[%s5 + $0x1c] sm:$0xf]
        %v968 = vld [vmem:[%s5 + $0x20] sm:$0xf]
        %v969 = vld [vmem:[%s5 + $0x24] sm:$0xf]
        %v970 = vld [vmem:[%s5 + $0x28] sm:$0xf]
        %v971 = vld [vmem:[%s5 + $0x2c] sm:$0xf]
        %v972 = vld [vmem:[%s5 + $0x30] sm:$0xf]
        %v973 = vld [vmem:[%s5 + $0x34] sm:$0xf]
        %v974 = vld [vmem:[%s5 + $0x38] sm:$0xf]
        %v975 = vld [vmem:[%s5 + $0x3c] sm:$0xf]
        %v976 = vld [vmem:[%s6] sm:$0x1]
        %v978 = vlaneseq
        %v979 = vshrl.u32 %v978, 7
        %v980 = vsub.s32 0, %v979
        %v981 = vrot.slane %v976, %v980
        %v999 = vunpack.c.l.b16 %v960
        %v1000 = vunpack.c.l.b16 %v961
        %v1001 = vunpack.c.l.b16 %v962
        %v1002 = vunpack.c.l.b16 %v963
        %v1003 = vunpack.c.l.b16 %v964
        %v1004 = vunpack.c.l.b16 %v965
        %v1005 = vunpack.c.l.b16 %v966
        %v1006 = vunpack.c.l.b16 %v967
        %v1007 = vunpack.c.l.b16 %v968
        %v1008 = vunpack.c.l.b16 %v969
        %v1009 = vunpack.c.l.b16 %v970
        %v1010 = vunpack.c.l.b16 %v971
        %v1011 = vunpack.c.l.b16 %v972
        %v1012 = vunpack.c.l.b16 %v973
        %v1013 = vunpack.c.l.b16 %v974
        %v1014 = vunpack.c.l.b16 %v975
        %v1015 = vpack.c.b16 %v1000, %v999
        %v1016 = vpack.c.b16 %v1002, %v1001
        %v1017 = vpack.c.b16 %v1004, %v1003
        %v1018 = vpack.c.b16 %v1006, %v1005
        %v1019 = vpack.c.b16 %v1008, %v1007
        %v1020 = vpack.c.b16 %v1010, %v1009
        %v1021 = vpack.c.b16 %v1012, %v1011
        %v1022 = vpack.c.b16 %v1014, %v1013
        %1031 = vmatprep.subr.bf16.mxu0 0
        %1032 = vmatpush1.bf16.msra.mxu0 %v1022
        %1033 = vmatprep.subr.bf16.mxu0 0
        %1034 = vmatpush1.bf16.msra.mxu0 %v1021
        %1035 = vmatprep.subr.bf16.mxu0 0
        %1036 = vmatpush1.bf16.msra.mxu0 %v1020
        %1037 = vmatprep.subr.bf16.mxu0 0
        %1038 = vmatpush1.bf16.msra.mxu0 %v1019
        %1039 = vmatprep.subr.bf16.mxu0 0
        %1040 = vmatpush1.bf16.msra.mxu0 %v1018
        %1041 = vmatprep.subr.bf16.mxu0 0
        %1042 = vmatpush1.bf16.msra.mxu0 %v1017
        %1043 = vmatprep.subr.bf16.mxu0 0
        %1044 = vmatpush1.bf16.msra.mxu0 %v1016
        %1045 = vmatprep.subr.bf16.mxu0 0
        %1046 = vmatpush1.bf16.msra.mxu0 %v1015
        %1047 = vmatprep.subr.bf16.mxu0 0
        %1048 = vmatpush2.bf16.msra.mxu0 0
        %1049 = vmatprep.subr.bf16.mxu0 0
        %1050 = vmatpush2.bf16.msra.mxu0 0
        %1051 = vmatprep.subr.bf16.mxu0 0
        %1052 = vmatpush2.bf16.msra.mxu0 0
        %1053 = vmatprep.subr.bf16.mxu0 0
        %1054 = vmatpush2.bf16.msra.mxu0 0
        %1055 = vmatprep.subr.bf16.mxu0 0
        %1056 = vmatpush2.bf16.msra.mxu0 0
        %1057 = vmatprep.subr.bf16.mxu0 0
        %1058 = vmatpush2.bf16.msra.mxu0 0
        %1059 = vmatprep.subr.bf16.mxu0 0
        %1060 = vmatpush2.bf16.msra.mxu0 0
        %1061 = vmatprep.subr.bf16.mxu0 0
        %1062 = vmatpush2.bf16.msra.mxu0 0
        %1063 = vmatprep.mubr.bf16.mxu0 0
        %1064 = vmatmul.mubr.bf16.gmra.mxu0 %v847
        %v1065 = vpop.f32.mrf.mxu0
        %v1066 = vadd.f32 %v981, %v1065
        %v1067 = vpop.f32.mrf.mxu0
        %v1068 = vpop.f32.mrf.mxu0
        %v1069 = vpop.f32.mrf.mxu0
        %1070 = vdwg.mxu0
        %v1071 = vmax.f32 %v1066, 0.0
        %v1072 = vpack.c.bf16 %v1071, %v1071
        %v1073 = vld [vmem:[%s7] sm:$0xf]
        %v1074 = vld [vmem:[%s7 + $0x4] sm:$0xf]
        %v1075 = vld [vmem:[%s7 + $0x8] sm:$0xf]
        %v1076 = vld [vmem:[%s7 + $0xc] sm:$0xf]
        %v1077 = vld [vmem:[%s7 + $0x10] sm:$0xf]
        %v1078 = vld [vmem:[%s7 + $0x14] sm:$0xf]
        %v1079 = vld [vmem:[%s7 + $0x18] sm:$0xf]
        %v1080 = vld [vmem:[%s7 + $0x1c] sm:$0xf]
        %v1081 = vld [vmem:[%s7 + $0x20] sm:$0xf]
        %v1082 = vld [vmem:[%s7 + $0x24] sm:$0xf]
        %v1083 = vld [vmem:[%s7 + $0x28] sm:$0xf]
        %v1084 = vld [vmem:[%s7 + $0x2c] sm:$0xf]
        %v1085 = vld [vmem:[%s7 + $0x30] sm:$0xf]
        %v1086 = vld [vmem:[%s7 + $0x34] sm:$0xf]
        %v1087 = vld [vmem:[%s7 + $0x38] sm:$0xf]
        %v1088 = vld [vmem:[%s7 + $0x3c] sm:$0xf]
        %v1089 = vld [vmem:[%s8] sm:$0x1]
        %v1091 = vlaneseq
        %v1092 = vshrl.u32 %v1091, 7
        %v1093 = vsub.s32 0, %v1092
        %v1094 = vrot.slane %v1089, %v1093
        %v1112 = vunpack.c.l.b16 %v1073
        %v1113 = vunpack.c.l.b16 %v1074
        %v1114 = vunpack.c.l.b16 %v1075
        %v1115 = vunpack.c.l.b16 %v1076
        %v1116 = vunpack.c.l.b16 %v1077
        %v1117 = vunpack.c.l.b16 %v1078
        %v1118 = vunpack.c.l.b16 %v1079
        %v1119 = vunpack.c.l.b16 %v1080
        %v1120 = vunpack.c.l.b16 %v1081
        %v1121 = vunpack.c.l.b16 %v1082
        %v1122 = vunpack.c.l.b16 %v1083
        %v1123 = vunpack.c.l.b16 %v1084
        %v1124 = vunpack.c.l.b16 %v1085
        %v1125 = vunpack.c.l.b16 %v1086
        %v1126 = vunpack.c.l.b16 %v1087
        %v1127 = vunpack.c.l.b16 %v1088
        %v1128 = vpack.c.b16 %v1113, %v1112
        %v1129 = vpack.c.b16 %v1115, %v1114
        %v1130 = vpack.c.b16 %v1117, %v1116
        %v1131 = vpack.c.b16 %v1119, %v1118
        %v1132 = vpack.c.b16 %v1121, %v1120
        %v1133 = vpack.c.b16 %v1123, %v1122
        %v1134 = vpack.c.b16 %v1125, %v1124
        %v1135 = vpack.c.b16 %v1127, %v1126
        %1144 = vmatprep.subr.bf16.mxu0 0
        %1145 = vmatpush1.bf16.msra.mxu0 %v1135
        %1146 = vmatprep.subr.bf16.mxu0 0
        %1147 = vmatpush1.bf16.msra.mxu0 %v1134
        %1148 = vmatprep.subr.bf16.mxu0 0
        %1149 = vmatpush1.bf16.msra.mxu0 %v1133
        %1150 = vmatprep.subr.bf16.mxu0 0
        %1151 = vmatpush1.bf16.msra.mxu0 %v1132
        %1152 = vmatprep.subr.bf16.mxu0 0
        %1153 = vmatpush1.bf16.msra.mxu0 %v1131
        %1154 = vmatprep.subr.bf16.mxu0 0
        %1155 = vmatpush1.bf16.msra.mxu0 %v1130
        %1156 = vmatprep.subr.bf16.mxu0 0
        %1157 = vmatpush1.bf16.msra.mxu0 %v1129
        %1158 = vmatprep.subr.bf16.mxu0 0
        %1159 = vmatpush1.bf16.msra.mxu0 %v1128
        %1160 = vmatprep.subr.bf16.mxu0 0
        %1161 = vmatpush2.bf16.msra.mxu0 0
        %1162 = vmatprep.subr.bf16.mxu0 0
        %1163 = vmatpush2.bf16.msra.mxu0 0
        %1164 = vmatprep.subr.bf16.mxu0 0
        %1165 = vmatpush2.bf16.msra.mxu0 0
        %1166 = vmatprep.subr.bf16.mxu0 0
        %1167 = vmatpush2.bf16.msra.mxu0 0
        %1168 = vmatprep.subr.bf16.mxu0 0
        %1169 = vmatpush2.bf16.msra.mxu0 0
        %1170 = vmatprep.subr.bf16.mxu0 0
        %1171 = vmatpush2.bf16.msra.mxu0 0
        %1172 = vmatprep.subr.bf16.mxu0 0
        %1173 = vmatpush2.bf16.msra.mxu0 0
        %1174 = vmatprep.subr.bf16.mxu0 0
        %1175 = vmatpush2.bf16.msra.mxu0 0
        %1176 = vmatprep.mubr.bf16.mxu0 0
        %1177 = vmatmul.mubr.bf16.gmra.mxu0 %v1072
        %v1178 = vpop.f32.mrf.mxu0
        %v1179 = vadd.f32 %v1094, %v1178
        %v1180 = vpop.f32.mrf.mxu0
        %v1181 = vpop.f32.mrf.mxu0
        %v1182 = vpop.f32.mrf.mxu0
        %1183 = vdwg.mxu0
        %v1184 = vmul.f32 %v1179, %v1179
        %1185 = vadd.xlane.f32.xlu0 %v1184
        %v1186 = vpop.xlane.xlu0 %1185
        %v1187 = vmax.f32 %v1186, 1e-24
        %v1188 = vrsqrt.pop %v1187
        %v1189 = vmul.f32 %v1179, %v1188
        %1190 = vst [vmem:[%s10] sm:$0xff] %v1189
      $region72: #{backbone_forward.1} parent=55 // pred_fallthru
        _
      // Predicated region
      $region73: #{backbone_forward.1} parent=55 // pred_check
        %p1191 = pneg %p243
      $region74: #{backbone_forward.1} parent=55 // pred_check_branch
        %1193 = sbr.rel (%p1191) target = $region76
      $region75: #{backbone_forward.1} parent=55 // pred_region
        _
      $region76: #{backbone_forward.1} parent=55 // pred_fallthru
        _
      // Predicated region
      $region77: #{backbone_forward.1} parent=55 // pred_check
        %p1194 = pneg %p264
      $region78: #{backbone_forward.1} parent=55 // pred_check_branch
        %1196 = sbr.rel (%p1194) target = $region80
      $region79: #{backbone_forward.1} parent=55 // pred_region
        _
      $region80: #{backbone_forward.1} parent=55 // pred_fallthru
        _
      // Predicated region
      $region81: #{backbone_forward.1} parent=55 // pred_check
        %p1197 = pneg %p243
      $region82: #{backbone_forward.1} parent=55 // pred_check_branch
        %1199 = sbr.rel (%p1197) target = $region84
      $region83: #{backbone_forward.1} parent=55 // pred_region
        _
      $region84: #{backbone_forward.1} parent=55 // pred_fallthru
        _
      // Predicated region
      $region85: #{backbone_forward.1} parent=55 // pred_check
        %p1200 = pneg %p264
      $region86: #{backbone_forward.1} parent=55 // pred_check_branch
        %1202 = sbr.rel (%p1200) target = $region88
      $region87: #{backbone_forward.1} parent=55 // pred_region
        _
      $region88: #{backbone_forward.1} parent=55 // pred_fallthru
        _
    $region56: #{backbone_forward.1} parent=5 // pred_fallthru
      _
    %p1203 = scmp.le.s32.totalorder 2, %s17
    // Predicated region
    $region89: #{backbone_forward.1} parent=5 // pred_check
      %p1204 = pneg %p1203
    $region90: #{backbone_forward.1} parent=5 // pred_check_branch
      %1206 = sbr.rel (%p1204) target = $region92
    $region91: #{backbone_forward.1} parent=5 // pred_region
      %s1207 = ssub.s32 %s17, 2
    $region92: #{backbone_forward.1} parent=5 // pred_fallthru
      _
  $region6: #{backbone_forward.1} parent=0 // loop_footer
    %s21 = sadd.s32 1, %s17
  $region7: #{backbone_forward.1} parent=0 // loop_footer_branch
    %16 = sbr.rel target = $region3
  $region8: #{backbone_forward.1} parent=0 // loop_exit
    _

</llo_original>
